<compile_context>
chip_gen: v6e
topology: v6e:2x2x1
jax: 0.10.0
libtpu: 0.0.40
codegen_flags: <defaults>
</compile_context>

<pallas_src>
import math

import jax
import jax.numpy as jnp
import numpy as np
from jax import lax
from jax.experimental import pallas as pl
from jax.experimental.pallas import tpu as pltpu


_INV_SQRT2 = 1.0 / math.sqrt(2.0)
_SQRT_2_OVER_PI = math.sqrt(2.0 / math.pi)


def _gelu_exact(x):
    # PyTorch default F.gelu: 0.5 * x * (1 + erf(x / sqrt(2))).
    # NOTE: lax.erf lowers to a VALU polynomial on TPU (it is NOT a single EUP
    # transcendental).  Use the tanh variant below to move work onto the EUP.
    return 0.5 * x * (1.0 + lax.erf(x * _INV_SQRT2))


def _gelu_tanh(x):
    # tanh-approximate GELU; tanh is a native EUP op (separate VLIW slot).
    return 0.5 * x * (1.0 + jnp.tanh(_SQRT_2_OVER_PI * (x + 0.044715 * x * x * x)))


# ----------------------------------------------------------------------------
# Pallas kernel
# ----------------------------------------------------------------------------
def _make_critic_kernel(num_hidden, minlogv, maxlogv, use_approx_gelu):
    """Kernel args (per batch tile):
         (state, action, W0_s, W0_a, b0, W1, b1, ..., W_head, b_head2, out)
       W_head = [W_mean | W_logvar]  (h_last, 2),  b_head2 = (2, 1)
       out[0, :] = mean row,  out[1, :] = exp(clip(log_var)) row."""
    gelu = _gelu_tanh if use_approx_gelu else _gelu_exact

    def kernel(state_ref, action_ref, *rest):
        out_ref = rest[-1]
        p = rest[:-1]

        # First hidden layer: split matmul over state / action inputs
        # (avoids materializing a concatenated activation array in HBM).
        x = jnp.dot(state_ref[...], p[0][...],
                    preferred_element_type=jnp.float32)
        x = x + jnp.dot(action_ref[...], p[1][...],
                        preferred_element_type=jnp.float32)
        x = gelu(x + p[2][...])

        idx = 3
        for _ in range(num_hidden - 1):
            w = p[idx][...]
            b = p[idx + 1][...]
            x = gelu(jnp.dot(x, w, preferred_element_type=jnp.float32) + b)
            idx += 2

        # Fused heads, produced lane-dense: (2, tile_b) with batch on the lane
        # axis.  W_head (h, 2) contracted against x (tile_b, h) on h.
        head = lax.dot_general(
            p[idx][...], x,
            dimension_numbers=(((0,), (1,)), ((), ())),
            preferred_element_type=jnp.float32) + p[idx + 1][...]
        row = lax.broadcasted_iota(jnp.int32, head.shape, 0)
        clipped = jnp.clip(head, minlogv, maxlogv)
        out_ref[...] = jnp.where(row == 1, jnp.exp(clipped), head)

    return kernel


# ----------------------------------------------------------------------------
# Wrapper: batch tiling, param flattening, pallas_call setup
# ----------------------------------------------------------------------------
def _round_up(x, m):
    return ((x + m - 1) // m) * m


def _num_tensorcores():
    """Best-effort TensorCores-per-device query (v7x has 2).  Falls back to 1."""
    try:
        dev = jax.devices()[0]
        for attr in ("num_cores", "core_count"):
            n = getattr(dev, attr, None)
            if n:
                return max(1, min(2, int(n)))
    except Exception:
        pass
    return 1


def _choose_tile_b(B, state_dim, action_dim, hidden_width, num_cores, tile_b_max):
    """Pick the batch tile from the lane-padded VMEM footprint.

    Per batch row the kernel holds (double-buffered) a (tile_b, S) and a
    (tile_b, A) input block (lane-padded to 128), the (2, tile_b) output block
    (sublane-padded to 8), plus ~2 live activation tiles of the widest hidden
    layer.  24 MiB budget keeps us comfortably under v7x's 64 MiB VMEM."""
    B8 = _round_up(B, 8)
    s_pad = _round_up(max(state_dim, 1), 128)
    a_pad = _round_up(max(action_dim, 1), 128)
    h_pad = max([_round_up(h, 128) for h in hidden_width] + [128])
    per_row_bytes = 2 * 4 * (s_pad + a_pad + 8) + 2 * 4 * h_pad
    budget = 24 * 1024 * 1024
    cap = (budget // per_row_bytes) // 128 * 128
    cap = max(128, min(cap, max(128, (tile_b_max // 128) * 128)))

    if B8 <= 128:
        return B8                       # single tile; can't split below 128 lanes
    if num_cores <= 1:
        return B8 if B8 <= cap else cap
    # >= 2 TensorCores: keep >= num_cores grid steps so the "parallel" batch
    # axis actually shards across cores (v7x megacore).
    per_core = _round_up(pl.cdiv(B8, num_cores), 128)
    return max(128, min(cap, per_core))


def critic_forward(state, action, params, minlogv, maxlogv, *,
                   tile_b=None, tile_b_max=8192, num_cores=None,
                   use_approx_gelu=False):
    """params = {'hidden': [(W, b), ...], 'mean': (W, b), 'log_var': (W, b)}
    W shapes are (in_dim, out_dim); b shapes are (1, out_dim)."""
    state = state.astype(jnp.float32)
    action = action.astype(jnp.float32)
    B, S = state.shape
    A = action.shape[1]

    num_hidden = len(params["hidden"])
    assert num_hidden >= 1, "Critic with no hidden layers is not supported"
    # TODO(synk): support hidden_width=() by splitting the head weights instead.
    hidden_width = [w.shape[1] for (w, _) in params["hidden"]]

    if num_cores is None:
        num_cores = _num_tensorcores()
    if tile_b is None:
        tile_b = _choose_tile_b(B, S, A, hidden_width, num_cores, tile_b_max)
    grid_n = pl.cdiv(B, tile_b)
    B_pad = grid_n * tile_b
    assert tile_b % 8 == 0, "batch tile must be a sublane multiple (8)"
    assert grid_n == 1 or tile_b % 128 == 0, \
        "multi-tile grids need a 128-multiple tile for the lane-dense output"

    # Flatten params: split first hidden layer's weight into state/action
    # halves; fuse the mean / log_var heads into a single (h_last, 2) matmul.
    w0, b0 = params["hidden"][0]
    flat = [w0[:S, :], w0[S:, :], b0]
    for (w, b) in params["hidden"][1:]:
        flat += [w, b]
    w_head = jnp.concatenate([params["mean"][0], params["log_var"][0]], axis=1)
    b_head2 = jnp.concatenate([params["mean"][1], params["log_var"][1]],
                              axis=1).reshape(2, 1)
    flat += [w_head, b_head2]

    kernel = _make_critic_kernel(num_hidden, float(minlogv), float(maxlogv),
                                 use_approx_gelu)

    def batch_in_spec(d):
        return pl.BlockSpec((tile_b, d), lambda i: (i, 0))

    def resident_spec(arr):
        # Full-array block, constant index_map -> stays VMEM-resident.
        return pl.BlockSpec(arr.shape, lambda i, n=arr.ndim: (0,) * n)

    in_specs = [batch_in_spec(S), batch_in_spec(A)] + \
               [resident_spec(a) for a in flat]
    out_spec = pl.BlockSpec((2, tile_b), lambda i: (0, i))   # lane-dense output

    # VMEM budget from padded block sizes (double-buffered) + activations.
    s_pad = _round_up(S, 128)
    a_pad = _round_up(A, 128)
    h_pad = max([_round_up(h, 128) for h in hidden_width] + [128])
    io_bytes = 2 * 4 * tile_b * (s_pad + a_pad + 8)
    act_bytes = 2 * 4 * tile_b * h_pad
    w_bytes = sum(2 * 4 * _round_up(a.shape[0], 8) * _round_up(a.shape[1], 128)
                  for a in flat)
    needed = io_bytes + act_bytes + w_bytes + (4 << 20)
    vmem_limit = int(min(48 << 20, max(16 << 20, needed + needed // 2)))

    # Rough cost hint for XLA scheduling around the custom call.
    widths = [S + A] + hidden_width + [2]
    flops = int(2 * B_pad * sum(widths[i] * widths[i + 1]
                                for i in range(len(widths) - 1)))
    transcendentals = int(B_pad * (sum(hidden_width) + 2))
    bytes_accessed = int(4 * (B * (S + A) + 2 * B_pad
                              + sum(int(np.prod(a.shape)) for a in flat)))

    out = pl.pallas_call(
        kernel,
        out_shape=jax.ShapeDtypeStruct((2, B_pad), jnp.float32),
        grid=(grid_n,),
        in_specs=in_specs,
        out_specs=out_spec,
        compiler_params=pltpu.CompilerParams(
            dimension_semantics=("parallel",),       # megacore sharding on v7x
            vmem_limit_bytes=vmem_limit),
        cost_estimate=pl.CostEstimate(
            flops=flops,
            transcendentals=transcendentals,
            bytes_accessed=bytes_accessed),
    )(state, action, *flat)

    mean = out[0, :B][:, None]
    var = out[1, :B][:, None]
    return mean, var


# ----------------------------------------------------------------------------
# Pure-JAX reference (same math) for a sanity check.
# ----------------------------------------------------------------------------
def critic_reference(state, action, params, minlogv, maxlogv,
                     use_approx_gelu=False):
    gelu = _gelu_tanh if use_approx_gelu else _gelu_exact
    x = jnp.concatenate([state, action], axis=1).astype(jnp.float32)
    for (w, b) in params["hidden"]:
        x = gelu(x @ w + b)
    mean = x @ params["mean"][0] + params["mean"][1]
    log_var = jnp.clip(x @ params["log_var"][0] + params["log_var"][1],
                       minlogv, maxlogv)
    return mean, jnp.exp(log_var)


# ----------------------------------------------------------------------------
# Deterministic parameter init (mimics nn.Linear uniform(-1/sqrt(fan_in), ..))
# ----------------------------------------------------------------------------
def init_critic_params(key, state_dim, action_dim, hidden_width):
    params = {"hidden": []}
    in_dim = state_dim + action_dim
    for h in hidden_width:
        key, kw, kb = jax.random.split(key, 3)
        bound = 1.0 / math.sqrt(in_dim)
        w = jax.random.uniform(kw, (in_dim, h), jnp.float32, -bound, bound)
        b = jax.random.uniform(kb, (1, h), jnp.float32, -bound, bound)
        params["hidden"].append((w, b))
        in_dim = h
    for name in ("mean", "log_var"):
        key, kw, kb = jax.random.split(key, 3)
        bound = 1.0 / math.sqrt(in_dim)
        w = jax.random.uniform(kw, (in_dim, 1), jnp.float32, -bound, bound)
        b = jax.random.uniform(kb, (1, 1), jnp.float32, -bound, bound)
        params[name] = (w, b)
    return params


if __name__ == "__main__":
    state_dim = 8
    action_dim = 4
    hidden_width = (32, 32)
    minlogv, maxlogv = -4.0, 2.0

    key = jax.random.PRNGKey(0)
    key, kp = jax.random.split(key)
    params = init_critic_params(kp, state_dim, action_dim, hidden_width)

    # --- small batch: auto tile selection, single grid step (B=4 -> tile 8) ---
    batch = 4
    key, ks, ka = jax.random.split(key, 3)
    state = jax.random.normal(ks, (batch, state_dim), jnp.float32)
    action = jax.random.normal(ka, (batch, action_dim), jnp.float32)

    mean, var = critic_forward(state, action, params, minlogv, maxlogv)
    mean, var = jax.block_until_ready((mean, var))

    ref_mean, ref_var = critic_reference(state, action, params, minlogv, maxlogv)
    assert mean.shape == (batch, 1) and var.shape == (batch, 1)
    assert np.allclose(np.asarray(mean), np.asarray(ref_mean), atol=1e-4, rtol=1e-4)
    assert np.allclose(np.asarray(var), np.asarray(ref_var), atol=1e-4, rtol=1e-4)
    assert bool(jnp.all(var > 0))

    # --- multi-tile grid + lane-dense output + ragged (unpadded) last block ---
    # B=300 with tile_b=128 -> grid=(3,), last block reads OOB rows (masked
    # off in the output slice); exercises the no-pad path.
    batch2 = 300
    key, ks2, ka2 = jax.random.split(key, 3)
    state2 = jax.random.normal(ks2, (batch2, state_dim), jnp.float32)
    action2 = jax.random.normal(ka2, (batch2, action_dim), jnp.float32)

    mean2, var2 = critic_forward(state2, action2, params, minlogv, maxlogv,
                                 tile_b=128)
    mean2, var2 = jax.block_until_ready((mean2, var2))
    ref_mean2, ref_var2 = critic_reference(state2, action2, params,
                                           minlogv, maxlogv)
    assert mean2.shape == (batch2, 1) and var2.shape == (batch2, 1)
    assert np.allclose(np.asarray(mean2), np.asarray(ref_mean2), atol=1e-4, rtol=1e-4)
    assert np.allclose(np.asarray(var2), np.asarray(ref_var2), atol=1e-4, rtol=1e-4)

    # --- optional tanh-approx GELU path (EUP transcendental) ---
    mean3, var3 = critic_forward(state, action, params, minlogv, maxlogv,
                                 use_approx_gelu=True)
    mean3, var3 = jax.block_until_ready((mean3, var3))
    ref_mean3, ref_var3 = critic_reference(state, action, params,
                                           minlogv, maxlogv,
                                           use_approx_gelu=True)
    assert np.allclose(np.asarray(mean3), np.asarray(ref_mean3), atol=1e-4, rtol=1e-4)
    assert np.allclose(np.asarray(var3), np.asarray(ref_var3), atol=1e-4, rtol=1e-4)

    print("KERNEL_OK")
</pallas_src>

<mosaic_0001>
module attributes {stable_mosaic.version = 11 : i64} {
  func.func @kernel(%arg0: i32, %arg1: memref<8x8xf32, #tpu.memory_space<vmem>>, %arg2: memref<8x4xf32, #tpu.memory_space<vmem>>, %arg3: memref<8x32xf32, #tpu.memory_space<vmem>>, %arg4: memref<4x32xf32, #tpu.memory_space<vmem>>, %arg5: memref<1x32xf32, #tpu.memory_space<vmem>>, %arg6: memref<32x32xf32, #tpu.memory_space<vmem>>, %arg7: memref<1x32xf32, #tpu.memory_space<vmem>>, %arg8: memref<32x2xf32, #tpu.memory_space<vmem>>, %arg9: memref<2x1xf32, #tpu.memory_space<vmem>>, %arg10: memref<2x8xf32, #tpu.memory_space<vmem>>) attributes {dimension_semantics = [#tpu.dimension_semantics<parallel>], iteration_bounds = array<i64: 1>, scalar_prefetch = 0 : i64, scratch_operands = 0 : i64, tpu.core_type = #tpu.core_type<tc>, window_params = [{transform_indices = @transform_0, window_bounds = array<i64: 8, 8>}, {transform_indices = @transform_1, window_bounds = array<i64: 8, 4>}, {pipeline_mode = #tpu.pipeline_mode<synchronous>, transform_indices = @transform_2, window_bounds = array<i64: 8, 32>}, {pipeline_mode = #tpu.pipeline_mode<synchronous>, transform_indices = @transform_3, window_bounds = array<i64: 4, 32>}, {pipeline_mode = #tpu.pipeline_mode<synchronous>, transform_indices = @transform_4, window_bounds = array<i64: 1, 32>}, {pipeline_mode = #tpu.pipeline_mode<synchronous>, transform_indices = @transform_5, window_bounds = array<i64: 32, 32>}, {pipeline_mode = #tpu.pipeline_mode<synchronous>, transform_indices = @transform_6, window_bounds = array<i64: 1, 32>}, {pipeline_mode = #tpu.pipeline_mode<synchronous>, transform_indices = @transform_7, window_bounds = array<i64: 32, 2>}, {pipeline_mode = #tpu.pipeline_mode<synchronous>, transform_indices = @transform_8, window_bounds = array<i64: 2, 1>}, {transform_indices = @transform_9, window_bounds = array<i64: 2, 8>}]} {
    %c0 = arith.constant 0 : index
    %c0_0 = arith.constant 0 : index
    %0 = vector.load %arg1[%c0, %c0_0] : memref<8x8xf32, #tpu.memory_space<vmem>>, vector<8x8xf32>
    %c0_1 = arith.constant 0 : index
    %c0_2 = arith.constant 0 : index
    %1 = vector.load %arg3[%c0_1, %c0_2] : memref<8x32xf32, #tpu.memory_space<vmem>>, vector<8x32xf32>
    %cst = arith.constant dense<0.000000e+00> : vector<8x32xf32>
    %2 = tpu.matmul %0, %1, %cst {dimension_numbers = #tpu.dot_dimension_numbers<[1], [0], [0], [1], [0, 0, 1, 1], [], []>} : vector<8x8xf32>, vector<8x32xf32>, vector<8x32xf32> -> vector<8x32xf32>
    %c0_3 = arith.constant 0 : index
    %c0_4 = arith.constant 0 : index
    %3 = vector.load %arg2[%c0_3, %c0_4] : memref<8x4xf32, #tpu.memory_space<vmem>>, vector<8x4xf32>
    %c0_5 = arith.constant 0 : index
    %c0_6 = arith.constant 0 : index
    %4 = vector.load %arg4[%c0_5, %c0_6] : memref<4x32xf32, #tpu.memory_space<vmem>>, vector<4x32xf32>
    %cst_7 = arith.constant dense<0.000000e+00> : vector<8x32xf32>
    %5 = tpu.matmul %3, %4, %cst_7 {dimension_numbers = #tpu.dot_dimension_numbers<[1], [0], [0], [1], [0, 0, 1, 1], [], []>} : vector<8x4xf32>, vector<4x32xf32>, vector<8x32xf32> -> vector<8x32xf32>
    %6 = arith.addf %2, %5 : vector<8x32xf32>
    %c0_8 = arith.constant 0 : index
    %c0_9 = arith.constant 0 : index
    %7 = vector.load %arg5[%c0_8, %c0_9] : memref<1x32xf32, #tpu.memory_space<vmem>>, vector<1x32xf32>
    %8 = vector.broadcast %7 : vector<1x32xf32> to vector<8x32xf32>
    %9 = arith.addf %6, %8 : vector<8x32xf32>
    %cst_10 = arith.constant 5.000000e-01 : f32
    %10 = vector.broadcast %cst_10 : f32 to vector<8x32xf32>
    %11 = arith.mulf %10, %9 : vector<8x32xf32>
    %cst_11 = arith.constant 0.707106769 : f32
    %12 = vector.broadcast %cst_11 : f32 to vector<8x32xf32>
    %13 = arith.mulf %9, %12 : vector<8x32xf32>
    %14 = math.erf %13 : vector<8x32xf32>
    %cst_12 = arith.constant 1.000000e+00 : f32
    %15 = vector.broadcast %cst_12 : f32 to vector<8x32xf32>
    %16 = arith.addf %15, %14 : vector<8x32xf32>
    %17 = arith.mulf %11, %16 : vector<8x32xf32>
    %c0_13 = arith.constant 0 : index
    %c0_14 = arith.constant 0 : index
    %18 = vector.load %arg6[%c0_13, %c0_14] : memref<32x32xf32, #tpu.memory_space<vmem>>, vector<32x32xf32>
    %c0_15 = arith.constant 0 : index
    %c0_16 = arith.constant 0 : index
    %19 = vector.load %arg7[%c0_15, %c0_16] : memref<1x32xf32, #tpu.memory_space<vmem>>, vector<1x32xf32>
    %cst_17 = arith.constant dense<0.000000e+00> : vector<8x32xf32>
    %20 = tpu.matmul %17, %18, %cst_17 {dimension_numbers = #tpu.dot_dimension_numbers<[1], [0], [0], [1], [0, 0, 1, 1], [], []>} : vector<8x32xf32>, vector<32x32xf32>, vector<8x32xf32> -> vector<8x32xf32>
    %21 = vector.broadcast %19 : vector<1x32xf32> to vector<8x32xf32>
    %22 = arith.addf %20, %21 : vector<8x32xf32>
    %cst_18 = arith.constant 5.000000e-01 : f32
    %23 = vector.broadcast %cst_18 : f32 to vector<8x32xf32>
    %24 = arith.mulf %23, %22 : vector<8x32xf32>
    %cst_19 = arith.constant 0.707106769 : f32
    %25 = vector.broadcast %cst_19 : f32 to vector<8x32xf32>
    %26 = arith.mulf %22, %25 : vector<8x32xf32>
    %27 = math.erf %26 : vector<8x32xf32>
    %cst_20 = arith.constant 1.000000e+00 : f32
    %28 = vector.broadcast %cst_20 : f32 to vector<8x32xf32>
    %29 = arith.addf %28, %27 : vector<8x32xf32>
    %30 = arith.mulf %24, %29 : vector<8x32xf32>
    %c0_21 = arith.constant 0 : index
    %c0_22 = arith.constant 0 : index
    %31 = vector.load %arg8[%c0_21, %c0_22] : memref<32x2xf32, #tpu.memory_space<vmem>>, vector<32x2xf32>
    %cst_23 = arith.constant dense<0.000000e+00> : vector<2x8xf32>
    %32 = tpu.matmul %31, %30, %cst_23 {dimension_numbers = #tpu.dot_dimension_numbers<[0], [1], [1], [0], [0, 1, 1, 0], [], []>} : vector<32x2xf32>, vector<8x32xf32>, vector<2x8xf32> -> vector<2x8xf32>
    %c0_24 = arith.constant 0 : index
    %c0_25 = arith.constant 0 : index
    %33 = vector.load %arg9[%c0_24, %c0_25] : memref<2x1xf32, #tpu.memory_space<vmem>>, vector<2x1xf32>
    %34 = vector.broadcast %33 : vector<2x1xf32> to vector<2x8xf32>
    %35 = arith.addf %32, %34 : vector<2x8xf32>
    %36 = tpu.iota {dimensions = array<i32: 0>} : vector<2x8xi32>
    %cst_26 = arith.constant -4.000000e+00 : f32
    %cst_27 = arith.constant 2.000000e+00 : f32
    %37 = vector.broadcast %cst_26 : f32 to vector<2x8xf32>
    %38 = arith.maximumf %37, %35 : vector<2x8xf32>
    %39 = vector.broadcast %cst_27 : f32 to vector<2x8xf32>
    %40 = arith.minimumf %39, %38 : vector<2x8xf32>
    %c1_i32 = arith.constant 1 : i32
    %41 = vector.broadcast %c1_i32 : i32 to vector<2x8xi32>
    %42 = arith.cmpi eq, %36, %41 : vector<2x8xi32>
    %43 = math.exp %40 : vector<2x8xf32>
    %44 = arith.select %42, %43, %35 : vector<2x8xi1>, vector<2x8xf32>
    %c0_28 = arith.constant 0 : index
    %c0_29 = arith.constant 0 : index
    %45 = vector.load %arg10[%c0_28, %c0_29] : memref<2x8xf32, #tpu.memory_space<vmem>>, vector<2x8xf32>
    tpu.vector_store %arg10[%c0_28, %c0_29], %44 {strides = array<i32>} : memref<2x8xf32, #tpu.memory_space<vmem>>, vector<2x8xf32>,
    return
  }
  func.func @transform_0(%arg0: i32) -> (i32, i32) {
    %c0_i32 = arith.constant 0 : i32
    %c0_i32_0 = arith.constant 0 : i32
    return %arg0, %c0_i32 : i32, i32
  }
  func.func @transform_1(%arg0: i32) -> (i32, i32) {
    %c0_i32 = arith.constant 0 : i32
    %c0_i32_0 = arith.constant 0 : i32
    return %arg0, %c0_i32 : i32, i32
  }
  func.func @transform_2(%arg0: i32) -> (i32, i32) {
    %c0_i32 = arith.constant 0 : i32
    %c0_i32_0 = arith.constant 0 : i32
    %c0_i32_1 = arith.constant 0 : i32
    return %c0_i32, %c0_i32_0 : i32, i32
  }
  func.func @transform_3(%arg0: i32) -> (i32, i32) {
    %c0_i32 = arith.constant 0 : i32
    %c0_i32_0 = arith.constant 0 : i32
    %c0_i32_1 = arith.constant 0 : i32
    return %c0_i32, %c0_i32_0 : i32, i32
  }
  func.func @transform_4(%arg0: i32) -> (i32, i32) {
    %c0_i32 = arith.constant 0 : i32
    %c0_i32_0 = arith.constant 0 : i32
    %c0_i32_1 = arith.constant 0 : i32
    return %c0_i32, %c0_i32_0 : i32, i32
  }
  func.func @transform_5(%arg0: i32) -> (i32, i32) {
    %c0_i32 = arith.constant 0 : i32
    %c0_i32_0 = arith.constant 0 : i32
    %c0_i32_1 = arith.constant 0 : i32
    return %c0_i32, %c0_i32_0 : i32, i32
  }
  func.func @transform_6(%arg0: i32) -> (i32, i32) {
    %c0_i32 = arith.constant 0 : i32
    %c0_i32_0 = arith.constant 0 : i32
    %c0_i32_1 = arith.constant 0 : i32
    return %c0_i32, %c0_i32_0 : i32, i32
  }
  func.func @transform_7(%arg0: i32) -> (i32, i32) {
    %c0_i32 = arith.constant 0 : i32
    %c0_i32_0 = arith.constant 0 : i32
    %c0_i32_1 = arith.constant 0 : i32
    return %c0_i32, %c0_i32_0 : i32, i32
  }
  func.func @transform_8(%arg0: i32) -> (i32, i32) {
    %c0_i32 = arith.constant 0 : i32
    %c0_i32_0 = arith.constant 0 : i32
    %c0_i32_1 = arith.constant 0 : i32
    return %c0_i32, %c0_i32_0 : i32, i32
  }
  func.func @transform_9(%arg0: i32) -> (i32, i32) {
    %c0_i32 = arith.constant 0 : i32
    %c0_i32_0 = arith.constant 0 : i32
    return %c0_i32, %arg0 : i32, i32
  }
}

</mosaic_0001>

<llo_original>
// kernel: tpu_custom_call.1
$region0: #{tpu_custom_call.1}
  #allocation0 [shape = 'u32[]', space=smem, size = 0x4, offset = 0x4, fixed_abs, tag = 'smem constant byte address 0x4 - core index']
  #allocation1 [shape = 'u32[144,128]{1,0:T(1,128)}', space=vmem, size = 0x12000, scoped, tag = 'internal scratch']
  %s0 = inlined_call_operand.vmem [shape: f32[4,8], index: 0, kind: input, shape index: {}]
  %s1 = inlined_call_operand.hbm [shape: f32[4,4], index: 1, kind: input, shape index: {}]
  %s2 = inlined_call_operand.vmem [shape: f32[8,32], index: 2, kind: input, shape index: {}]
  %s3 = inlined_call_operand.hbm [shape: f32[4,32], index: 3, kind: input, shape index: {}]
  %s4 = inlined_call_operand.hbm [shape: f32[1,32], index: 4, kind: input, shape index: {}]
  %s5 = inlined_call_operand.vmem [shape: f32[32,32], index: 5, kind: input, shape index: {}]
  %s6 = inlined_call_operand.hbm [shape: f32[1,32], index: 6, kind: input, shape index: {}]
  %s7 = inlined_call_operand.vmem [shape: f32[32,2], index: 7, kind: input, shape index: {}]
  %s8 = inlined_call_operand.vmem [shape: f32[2,1], index: 8, kind: input, shape index: {}]
  %s9 = inlined_call_operand.hbm [shape: f32[2,8], index: 9, kind: output, shape index: {}]
  %s10 = sld [smem:[#allocation0]]
  $region62: #{tpu_custom_call.1} parent=0
    _
  %s12 = ssub.s32 1, %s10
  %s13 = scalar_select 0, %s12, %s10
  $region1: #{tpu_custom_call.1} parent=0
    #allocation2 [shape = 'u8[4096]{0}', space=vmem, size = 0x1000, scoped, tag = 'input window, operand 1, single buffered']
    #allocation3 [shape = 's32[1]{0}', space=sflag, size = 0x4, scoped, tag = 'scoped memory for tpu_custom_call.1']
    #allocation4 [shape = 's32[1]{0}', space=sflag, size = 0x4, scoped, tag = 'scoped memory for tpu_custom_call.1']
    #allocation5 [shape = 'u8[2048]{0}', space=vmem, size = 0x800, scoped, tag = 'input window, operand 3, single buffered']
    #allocation6 [shape = 's32[1]{0}', space=sflag, size = 0x4, scoped, tag = 'scoped memory for tpu_custom_call.1']
    #allocation7 [shape = 'u8[512]{0}', space=vmem, size = 0x400, scoped, tag = 'input window, operand 4, single buffered']
    #allocation8 [shape = 'u8[512]{0}', space=vmem, size = 0x400, scoped, tag = 'input window, operand 6, single buffered']
    #allocation9 [shape = 's32[1]{0}', space=sflag, size = 0x4, scoped, tag = 'scoped memory for tpu_custom_call.1']
    #allocation10 [shape = 'u8[1024]{0}', space=vmem, size = 0x400, scoped, tag = 'output window, operand 0, single buffered']
    %14 = vsyncpa [#allocation3], 0
    %15 = vsyncpa [#allocation6], 0
    %16 = vsyncpa [#allocation9], 0
    %17 = vsyncpa [#allocation4], 0
    // Predicated region
    $region2: #{tpu_custom_call.1} parent=1 // pred_check
      _
    $region3: #{tpu_custom_call.1} parent=1 // pred_check_branch
      %19 = sbr.rel (0) target = $region5
    $region4: #{tpu_custom_call.1} parent=1 // pred_region
      _
    $region5: #{tpu_custom_call.1} parent=1 // pred_fallthru
      _
    // Predicated region
    $region6: #{tpu_custom_call.1} parent=1 // pred_check
      _
    $region7: #{tpu_custom_call.1} parent=1 // pred_check_branch
      %21 = sbr.rel (0) target = $region9
    $region8: #{tpu_custom_call.1} parent=1 // pred_region
      %s23 = ssub.s32 128, 64
      %24 = vsyncadd [#allocation3], %s23
      %s25 = sshll.u32 [#allocation2], 4
      %s26 = int_to_ptr.vmem [resolvable:$true] %s25
      %31 = dma.hbm_to_vmem [thread:$0]  %s1, 64, %s26, [#allocation3], 64, 64, 4
    $region9: #{tpu_custom_call.1} parent=1 // pred_fallthru
      _
    // Predicated region
    $region10: #{tpu_custom_call.1} parent=1 // pred_check
      _
    $region11: #{tpu_custom_call.1} parent=1 // pred_check_branch
      %33 = sbr.rel (0) target = $region13
    $region12: #{tpu_custom_call.1} parent=1 // pred_region
      _
    $region13: #{tpu_custom_call.1} parent=1 // pred_fallthru
      _
    // Predicated region
    $region14: #{tpu_custom_call.1} parent=1 // pred_check
      _
    $region15: #{tpu_custom_call.1} parent=1 // pred_check_branch
      %35 = sbr.rel (0) target = $region17
    $region16: #{tpu_custom_call.1} parent=1 // pred_region
      %s37 = ssub.s32 64, 64
      %38 = vsyncadd [#allocation6], %s37
      %s40 = sshll.u32 [#allocation5], 4
      %s41 = int_to_ptr.vmem [resolvable:$true] %s40
      %43 = dma.hbm_to_vmem [thread:$0]  %s3, 64, %s41, [#allocation6]
    $region17: #{tpu_custom_call.1} parent=1 // pred_fallthru
      _
    // Predicated region
    $region18: #{tpu_custom_call.1} parent=1 // pred_check
      _
    $region19: #{tpu_custom_call.1} parent=1 // pred_check_branch
      %45 = sbr.rel (0) target = $region21
    $region20: #{tpu_custom_call.1} parent=1 // pred_region
      %s47 = ssub.s32 16, 16
      %48 = vsyncadd [#allocation6], %s47
      %s50 = sshll.u32 [#allocation7], 4
      %s51 = int_to_ptr.vmem [resolvable:$true] %s50
      %53 = dma.hbm_to_vmem [thread:$0]  %s4, 16, %s51, [#allocation6]
    $region21: #{tpu_custom_call.1} parent=1 // pred_fallthru
      _
    // Predicated region
    $region22: #{tpu_custom_call.1} parent=1 // pred_check
      _
    $region23: #{tpu_custom_call.1} parent=1 // pred_check_branch
      %55 = sbr.rel (0) target = $region25
    $region24: #{tpu_custom_call.1} parent=1 // pred_region
      _
    $region25: #{tpu_custom_call.1} parent=1 // pred_fallthru
      _
    // Predicated region
    $region26: #{tpu_custom_call.1} parent=1 // pred_check
      _
    $region27: #{tpu_custom_call.1} parent=1 // pred_check_branch
      %57 = sbr.rel (0) target = $region29
    $region28: #{tpu_custom_call.1} parent=1 // pred_region
      %s59 = ssub.s32 16, 16
      %60 = vsyncadd [#allocation9], %s59
      %s62 = sshll.u32 [#allocation8], 4
      %s63 = int_to_ptr.vmem [resolvable:$true] %s62
      %65 = dma.hbm_to_vmem [thread:$0]  %s6, 16, %s63, [#allocation9]
    $region29: #{tpu_custom_call.1} parent=1 // pred_fallthru
      _
    // Predicated region
    $region30: #{tpu_custom_call.1} parent=1 // pred_check
      _
    $region31: #{tpu_custom_call.1} parent=1 // pred_check_branch
      %67 = sbr.rel (0) target = $region33
    $region32: #{tpu_custom_call.1} parent=1 // pred_region
      _
    $region33: #{tpu_custom_call.1} parent=1 // pred_fallthru
      _
    // Predicated region
    $region34: #{tpu_custom_call.1} parent=1 // pred_check
      _
    $region35: #{tpu_custom_call.1} parent=1 // pred_check_branch
      %69 = sbr.rel (0) target = $region37
    $region36: #{tpu_custom_call.1} parent=1 // pred_region
      _
    $region37: #{tpu_custom_call.1} parent=1 // pred_fallthru
      _
    // Predicated region
    $region38: #{tpu_custom_call.1} parent=1 // pred_check
      _
    $region39: #{tpu_custom_call.1} parent=1 // pred_check_branch
      %71 = sbr.rel (0) target = $region41
    $region40: #{tpu_custom_call.1} parent=1 // pred_region
      %72 = dma.done [#allocation3], 128
    $region41: #{tpu_custom_call.1} parent=1 // pred_fallthru
      _
    // Predicated region
    $region42: #{tpu_custom_call.1} parent=1 // pred_check
      _
    $region43: #{tpu_custom_call.1} parent=1 // pred_check_branch
      %74 = sbr.rel (0) target = $region45
    $region44: #{tpu_custom_call.1} parent=1 // pred_region
      %75 = dma.done [#allocation6], 64
    $region45: #{tpu_custom_call.1} parent=1 // pred_fallthru
      _
    // Predicated region
    $region46: #{tpu_custom_call.1} parent=1 // pred_check
      _
    $region47: #{tpu_custom_call.1} parent=1 // pred_check_branch
      %77 = sbr.rel (0) target = $region49
    $region48: #{tpu_custom_call.1} parent=1 // pred_region
      %78 = dma.done [#allocation6], 16
    $region49: #{tpu_custom_call.1} parent=1 // pred_fallthru
      _
    // Predicated region
    $region50: #{tpu_custom_call.1} parent=1 // pred_check
      _
    $region51: #{tpu_custom_call.1} parent=1 // pred_check_branch
      %80 = sbr.rel (0) target = $region53
    $region52: #{tpu_custom_call.1} parent=1 // pred_region
      %81 = dma.done [#allocation9], 16
    $region53: #{tpu_custom_call.1} parent=1 // pred_fallthru
      _
    %v82 = vld [vmem:[%s0] sm:$0xff]
    %v83 = vld [vmem:[%s2] sm:$0xff]
    %v84 = vld [vmem:[#allocation2] sm:$0xff]
    %v85 = vld [vmem:[#allocation5] sm:$0xf]
    %vm86 = vcmask 31744
    %v88 = vsel %vm86, %v84, 0
    %vm90 = vcmask 1043456
    %v92 = vsel %vm90, %v85, 0
    %94 = vmatprep.subr.mxu0 0.0
    %95 = vmatpush1.msra.mxu0 0.0
    %96 = vmatprep.subr.mxu0 0.0
    %97 = vmatpush1.msra.mxu0 0.0
    %98 = vmatprep.subr.mxu0 0.0
    %99 = vmatpush1.msra.mxu0 0.0
    %100 = vmatprep.subr.mxu0 0.0
    %101 = vmatpush1.msra.mxu0 0.0
    %102 = vmatprep.subr.mxu0 0.0
    %103 = vmatpush1.msra.mxu0 0.0
    %104 = vmatprep.subr.mxu0 0.0
    %105 = vmatpush1.msra.mxu0 0.0
    %106 = vmatprep.subr.mxu0 0.0
    %107 = vmatpush1.msra.mxu0 0.0
    %108 = vmatprep.subr.mxu0 0.0
    %109 = vmatpush1.msra.mxu0 0.0
    %110 = vmatprep.subr.mxu0 0.0
    %111 = vmatpush1.msra.mxu0 0.0
    %112 = vmatprep.subr.mxu0 0.0
    %113 = vmatpush1.msra.mxu0 0.0
    %114 = vmatprep.subr.mxu0 0.0
    %115 = vmatpush1.msra.mxu0 0.0
    %116 = vmatprep.subr.mxu0 0.0
    %117 = vmatpush1.msra.mxu0 0.0
    %118 = vmatprep.subr.mxu0 0.0
    %119 = vmatpush1.msra.mxu0 0.0
    %120 = vmatprep.subr.mxu0 0.0
    %121 = vmatpush1.msra.mxu0 0.0
    %122 = vmatprep.subr.mxu0 0.0
    %123 = vmatpush1.msra.mxu0 0.0
    %124 = vmatprep.subr.mxu0 0.0
    %125 = vmatpush1.msra.mxu0 %v92
    %126 = vmatprep.subr.mxu0 0.0
    %127 = vmatpush2.msra.mxu0 0.0
    %128 = vmatprep.subr.mxu0 0.0
    %129 = vmatpush2.msra.mxu0 0.0
    %130 = vmatprep.subr.mxu0 0.0
    %131 = vmatpush2.msra.mxu0 0.0
    %132 = vmatprep.subr.mxu0 0.0
    %133 = vmatpush2.msra.mxu0 0.0
    %134 = vmatprep.subr.mxu0 0.0
    %135 = vmatpush2.msra.mxu0 0.0
    %136 = vmatprep.subr.mxu0 0.0
    %137 = vmatpush2.msra.mxu0 0.0
    %138 = vmatprep.subr.mxu0 0.0
    %139 = vmatpush2.msra.mxu0 0.0
    %140 = vmatprep.subr.mxu0 0.0
    %141 = vmatpush2.msra.mxu0 0.0
    %142 = vmatprep.subr.mxu0 0.0
    %143 = vmatpush2.msra.mxu0 0.0
    %144 = vmatprep.subr.mxu0 0.0
    %145 = vmatpush2.msra.mxu0 0.0
    %146 = vmatprep.subr.mxu0 0.0
    %147 = vmatpush2.msra.mxu0 0.0
    %148 = vmatprep.subr.mxu0 0.0
    %149 = vmatpush2.msra.mxu0 0.0
    %150 = vmatprep.subr.mxu0 0.0
    %151 = vmatpush2.msra.mxu0 0.0
    %152 = vmatprep.subr.mxu0 0.0
    %153 = vmatpush2.msra.mxu0 0.0
    %154 = vmatprep.subr.mxu0 0.0
    %155 = vmatpush2.msra.mxu0 0.0
    %156 = vmatprep.subr.mxu0 0.0
    %157 = vmatpush2.msra.mxu0 0.0
    %158 = vmatprep.mubr.f32.mxu0 0.0
    %159 = vmatmul.mubr.f32.gmra.mxu0 %v88
    %v160 = vpop.f32.mrf.mxu0
    %v161 = vadd.f32 0.0, %v160
    %v162 = vpop.f32.mrf.mxu0
    %163 = vdwg.mxu0
    %vm164 = vcmask 64512
    %v166 = vsel %vm164, %v82, 0
    %168 = vmatprep.subr.mxu0 0.0
    %169 = vmatpush1.msra.mxu0 0.0
    %170 = vmatprep.subr.mxu0 0.0
    %171 = vmatpush1.msra.mxu0 0.0
    %172 = vmatprep.subr.mxu0 0.0
    %173 = vmatpush1.msra.mxu0 0.0
    %174 = vmatprep.subr.mxu0 0.0
    %175 = vmatpush1.msra.mxu0 0.0
    %176 = vmatprep.subr.mxu0 0.0
    %177 = vmatpush1.msra.mxu0 0.0
    %178 = vmatprep.subr.mxu0 0.0
    %179 = vmatpush1.msra.mxu0 0.0
    %180 = vmatprep.subr.mxu0 0.0
    %181 = vmatpush1.msra.mxu0 0.0
    %182 = vmatprep.subr.mxu0 0.0
    %183 = vmatpush1.msra.mxu0 0.0
    %184 = vmatprep.subr.mxu0 0.0
    %185 = vmatpush1.msra.mxu0 0.0
    %186 = vmatprep.subr.mxu0 0.0
    %187 = vmatpush1.msra.mxu0 0.0
    %188 = vmatprep.subr.mxu0 0.0
    %189 = vmatpush1.msra.mxu0 0.0
    %190 = vmatprep.subr.mxu0 0.0
    %191 = vmatpush1.msra.mxu0 0.0
    %192 = vmatprep.subr.mxu0 0.0
    %193 = vmatpush1.msra.mxu0 0.0
    %194 = vmatprep.subr.mxu0 0.0
    %195 = vmatpush1.msra.mxu0 0.0
    %196 = vmatprep.subr.mxu0 0.0
    %197 = vmatpush1.msra.mxu0 0.0
    %198 = vmatprep.subr.mxu0 0.0
    %199 = vmatpush1.msra.mxu0 %v83
    %200 = vmatprep.subr.mxu0 0.0
    %201 = vmatpush2.msra.mxu0 0.0
    %202 = vmatprep.subr.mxu0 0.0
    %203 = vmatpush2.msra.mxu0 0.0
    %204 = vmatprep.subr.mxu0 0.0
    %205 = vmatpush2.msra.mxu0 0.0
    %206 = vmatprep.subr.mxu0 0.0
    %207 = vmatpush2.msra.mxu0 0.0
    %208 = vmatprep.subr.mxu0 0.0
    %209 = vmatpush2.msra.mxu0 0.0
    %210 = vmatprep.subr.mxu0 0.0
    %211 = vmatpush2.msra.mxu0 0.0
    %212 = vmatprep.subr.mxu0 0.0
    %213 = vmatpush2.msra.mxu0 0.0
    %214 = vmatprep.subr.mxu0 0.0
    %215 = vmatpush2.msra.mxu0 0.0
    %216 = vmatprep.subr.mxu0 0.0
    %217 = vmatpush2.msra.mxu0 0.0
    %218 = vmatprep.subr.mxu0 0.0
    %219 = vmatpush2.msra.mxu0 0.0
    %220 = vmatprep.subr.mxu0 0.0
    %221 = vmatpush2.msra.mxu0 0.0
    %222 = vmatprep.subr.mxu0 0.0
    %223 = vmatpush2.msra.mxu0 0.0
    %224 = vmatprep.subr.mxu0 0.0
    %225 = vmatpush2.msra.mxu0 0.0
    %226 = vmatprep.subr.mxu0 0.0
    %227 = vmatpush2.msra.mxu0 0.0
    %228 = vmatprep.subr.mxu0 0.0
    %229 = vmatpush2.msra.mxu0 0.0
    %230 = vmatprep.subr.mxu0 0.0
    %231 = vmatpush2.msra.mxu0 0.0
    %232 = vmatprep.mubr.f32.mxu0 0.0
    %233 = vmatmul.mubr.f32.gmra.mxu0 %v166
    %v234 = vpop.f32.mrf.mxu0
    %v235 = vadd.f32 %v161, %v234
    %v236 = vpop.f32.mrf.mxu0
    %237 = vdwg.mxu0
    %v238 = vld [vmem:[#allocation7] sm:$0x1]
    %v240 = vlaneseq
    %v241 = vshrl.u32 %v240, 7
    %v242 = vsub.s32 0, %v241
    %v243 = vrot.slane %v238, %v242
    %v245 = vadd.f32 %v235, %v243
    %v246 = vmul.f32 %v245, 0.5
    %v247 = vmul.f32 %v245, 0.70710677
    %v248 = verf.f32.pop %v247
    %v249 = vadd.f32 %v248, 1.0
    %v250 = vmul.f32 %v246, %v249
    %v251 = vld [vmem:[%s5] sm:$0xff]
    %v252 = vld [vmem:[%s5 + $0x8] sm:$0xff]
    %v253 = vld [vmem:[%s5 + $0x10] sm:$0xff]
    %v254 = vld [vmem:[%s5 + $0x18] sm:$0xff]
    %v255 = vld [vmem:[#allocation8] sm:$0x1]
    %v257 = vlaneseq
    %v258 = vshrl.u32 %v257, 7
    %v259 = vsub.s32 0, %v258
    %v260 = vrot.slane %v255, %v259
    %vm262 = vcmask 261120
    %v264 = vsel %vm262, %v250, 0
    %266 = vmatprep.subr.mxu0 0.0
    %267 = vmatpush1.msra.mxu0 0.0
    %268 = vmatprep.subr.mxu0 0.0
    %269 = vmatpush1.msra.mxu0 0.0
    %270 = vmatprep.subr.mxu0 0.0
    %271 = vmatpush1.msra.mxu0 0.0
    %272 = vmatprep.subr.mxu0 0.0
    %273 = vmatpush1.msra.mxu0 0.0
    %274 = vmatprep.subr.mxu0 0.0
    %275 = vmatpush1.msra.mxu0 0.0
    %276 = vmatprep.subr.mxu0 0.0
    %277 = vmatpush1.msra.mxu0 0.0
    %278 = vmatprep.subr.mxu0 0.0
    %279 = vmatpush1.msra.mxu0 0.0
    %280 = vmatprep.subr.mxu0 0.0
    %281 = vmatpush1.msra.mxu0 0.0
    %282 = vmatprep.subr.mxu0 0.0
    %283 = vmatpush1.msra.mxu0 0.0
    %284 = vmatprep.subr.mxu0 0.0
    %285 = vmatpush1.msra.mxu0 0.0
    %286 = vmatprep.subr.mxu0 0.0
    %287 = vmatpush1.msra.mxu0 0.0
    %288 = vmatprep.subr.mxu0 0.0
    %289 = vmatpush1.msra.mxu0 0.0
    %290 = vmatprep.subr.mxu0 0.0
    %291 = vmatpush1.msra.mxu0 %v254
    %292 = vmatprep.subr.mxu0 0.0
    %293 = vmatpush1.msra.mxu0 %v253
    %294 = vmatprep.subr.mxu0 0.0
    %295 = vmatpush1.msra.mxu0 %v252
    %296 = vmatprep.subr.mxu0 0.0
    %297 = vmatpush1.msra.mxu0 %v251
    %298 = vmatprep.subr.mxu0 0.0
    %299 = vmatpush2.msra.mxu0 0.0
    %300 = vmatprep.subr.mxu0 0.0
    %301 = vmatpush2.msra.mxu0 0.0
    %302 = vmatprep.subr.mxu0 0.0
    %303 = vmatpush2.msra.mxu0 0.0
    %304 = vmatprep.subr.mxu0 0.0
    %305 = vmatpush2.msra.mxu0 0.0
    %306 = vmatprep.subr.mxu0 0.0
    %307 = vmatpush2.msra.mxu0 0.0
    %308 = vmatprep.subr.mxu0 0.0
    %309 = vmatpush2.msra.mxu0 0.0
    %310 = vmatprep.subr.mxu0 0.0
    %311 = vmatpush2.msra.mxu0 0.0
    %312 = vmatprep.subr.mxu0 0.0
    %313 = vmatpush2.msra.mxu0 0.0
    %314 = vmatprep.subr.mxu0 0.0
    %315 = vmatpush2.msra.mxu0 0.0
    %316 = vmatprep.subr.mxu0 0.0
    %317 = vmatpush2.msra.mxu0 0.0
    %318 = vmatprep.subr.mxu0 0.0
    %319 = vmatpush2.msra.mxu0 0.0
    %320 = vmatprep.subr.mxu0 0.0
    %321 = vmatpush2.msra.mxu0 0.0
    %322 = vmatprep.subr.mxu0 0.0
    %323 = vmatpush2.msra.mxu0 0.0
    %324 = vmatprep.subr.mxu0 0.0
    %325 = vmatpush2.msra.mxu0 0.0
    %326 = vmatprep.subr.mxu0 0.0
    %327 = vmatpush2.msra.mxu0 0.0
    %328 = vmatprep.subr.mxu0 0.0
    %329 = vmatpush2.msra.mxu0 0.0
    %330 = vmatprep.mubr.f32.mxu0 0.0
    %331 = vmatmul.mubr.f32.gmra.mxu0 %v264
    %v332 = vpop.f32.mrf.mxu0
    %v333 = vadd.f32 %v260, %v332
    %v334 = vpop.f32.mrf.mxu0
    %335 = vdwg.mxu0
    %v336 = vmul.f32 %v333, 0.5
    %v337 = vmul.f32 %v333, 0.70710677
    %v338 = verf.f32.pop %v337
    %v339 = vadd.f32 %v338, 1.0
    %v340 = vmul.f32 %v336, %v339
    %v341 = vld [vmem:[%s7] sm:$0xff]
    %v342 = vld [vmem:[%s7 + $0x8] sm:$0xff]
    %v343 = vld [vmem:[%s7 + $0x10] sm:$0xff]
    %v344 = vld [vmem:[%s7 + $0x18] sm:$0xff]
    %v345 = vld [vmem:[%s8] sm:$0x3]
    %347 = vset.pattern.permute.xlu0 0
    %348 = vperm.xlu0 %347, %v345
    %v349 = vpop.permute.xlu0 %348
    %351 = vxpose.xlu0.b32.start [1/16] %v341, 128
    %352 = vxpose.xlu0.b32.cont [2/16] %v342, 128
    %353 = vxpose.xlu0.b32.cont [3/16] %v343, 128
    %354 = vxpose.xlu0.b32.cont [4/16] %v344, 128
    %355 = vxpose.xlu0.b32.cont [5/16] 0.0, 128
    %356 = vxpose.xlu0.b32.cont [6/16] 0.0, 128
    %357 = vxpose.xlu0.b32.cont [7/16] 0.0, 128
    %358 = vxpose.xlu0.b32.cont [8/16] 0.0, 128
    %359 = vxpose.xlu0.b32.cont [9/16] 0.0, 128
    %360 = vxpose.xlu0.b32.cont [10/16] 0.0, 128
    %361 = vxpose.xlu0.b32.cont [11/16] 0.0, 128
    %362 = vxpose.xlu0.b32.cont [12/16] 0.0, 128
    %363 = vxpose.xlu0.b32.cont [13/16] 0.0, 128
    %364 = vxpose.xlu0.b32.cont [14/16] 0.0, 128
    %365 = vxpose.xlu0.b32.cont [15/16] 0.0, 128
    %366 = vxpose.xlu0.b32.end [16/16] 0.0, 128
    %v367 = vpop.trf.xlu0
    %v368 = vpop.trf.xlu0
    %v369 = vpop.trf.xlu0
    %v370 = vpop.trf.xlu0
    %v371 = vpop.trf.xlu0
    %v372 = vpop.trf.xlu0
    %v373 = vpop.trf.xlu0
    %v374 = vpop.trf.xlu0
    %v375 = vpop.trf.xlu0
    %v376 = vpop.trf.xlu0
    %v377 = vpop.trf.xlu0
    %v378 = vpop.trf.xlu0
    %v379 = vpop.trf.xlu0
    %v380 = vpop.trf.xlu0
    %v381 = vpop.trf.xlu0
    %v382 = vpop.trf.xlu0
    %v384 = vsel %vm262, %v367, 0
    %v387 = vsel %vm262, %v340, 0
    %389 = vmatprep.subr.mxu0 0.0
    %390 = vmatpush1.xpose.msra.mxu0 0.0
    %391 = vmatprep.subr.mxu0 0.0
    %392 = vmatpush1.xpose.msra.mxu0 0.0
    %393 = vmatprep.subr.mxu0 0.0
    %394 = vmatpush1.xpose.msra.mxu0 0.0
    %395 = vmatprep.subr.mxu0 0.0
    %396 = vmatpush1.xpose.msra.mxu0 0.0
    %397 = vmatprep.subr.mxu0 0.0
    %398 = vmatpush1.xpose.msra.mxu0 0.0
    %399 = vmatprep.subr.mxu0 0.0
    %400 = vmatpush1.xpose.msra.mxu0 0.0
    %401 = vmatprep.subr.mxu0 0.0
    %402 = vmatpush1.xpose.msra.mxu0 0.0
    %403 = vmatprep.subr.mxu0 0.0
    %404 = vmatpush1.xpose.msra.mxu0 0.0
    %405 = vmatprep.subr.mxu0 0.0
    %406 = vmatpush1.xpose.msra.mxu0 0.0
    %407 = vmatprep.subr.mxu0 0.0
    %408 = vmatpush1.xpose.msra.mxu0 0.0
    %409 = vmatprep.subr.mxu0 0.0
    %410 = vmatpush1.xpose.msra.mxu0 0.0
    %411 = vmatprep.subr.mxu0 0.0
    %412 = vmatpush1.xpose.msra.mxu0 0.0
    %413 = vmatprep.subr.mxu0 0.0
    %414 = vmatpush1.xpose.msra.mxu0 0.0
    %415 = vmatprep.subr.mxu0 0.0
    %416 = vmatpush1.xpose.msra.mxu0 0.0
    %417 = vmatprep.subr.mxu0 0.0
    %418 = vmatpush1.xpose.msra.mxu0 0.0
    %419 = vmatprep.subr.mxu0 0.0
    %420 = vmatpush1.xpose.msra.mxu0 %v387
    %421 = vmatprep.subr.mxu0 0.0
    %422 = vmatpush2.xpose.msra.mxu0 0.0
    %423 = vmatprep.subr.mxu0 0.0
    %424 = vmatpush2.xpose.msra.mxu0 0.0
    %425 = vmatprep.subr.mxu0 0.0
    %426 = vmatpush2.xpose.msra.mxu0 0.0
    %427 = vmatprep.subr.mxu0 0.0
    %428 = vmatpush2.xpose.msra.mxu0 0.0
    %429 = vmatprep.subr.mxu0 0.0
    %430 = vmatpush2.xpose.msra.mxu0 0.0
    %431 = vmatprep.subr.mxu0 0.0
    %432 = vmatpush2.xpose.msra.mxu0 0.0
    %433 = vmatprep.subr.mxu0 0.0
    %434 = vmatpush2.xpose.msra.mxu0 0.0
    %435 = vmatprep.subr.mxu0 0.0
    %436 = vmatpush2.xpose.msra.mxu0 0.0
    %437 = vmatprep.subr.mxu0 0.0
    %438 = vmatpush2.xpose.msra.mxu0 0.0
    %439 = vmatprep.subr.mxu0 0.0
    %440 = vmatpush2.xpose.msra.mxu0 0.0
    %441 = vmatprep.subr.mxu0 0.0
    %442 = vmatpush2.xpose.msra.mxu0 0.0
    %443 = vmatprep.subr.mxu0 0.0
    %444 = vmatpush2.xpose.msra.mxu0 0.0
    %445 = vmatprep.subr.mxu0 0.0
    %446 = vmatpush2.xpose.msra.mxu0 0.0
    %447 = vmatprep.subr.mxu0 0.0
    %448 = vmatpush2.xpose.msra.mxu0 0.0
    %449 = vmatprep.subr.mxu0 0.0
    %450 = vmatpush2.xpose.msra.mxu0 0.0
    %451 = vmatprep.subr.mxu0 0.0
    %452 = vmatpush2.xpose.msra.mxu0 0.0
    %453 = vmatprep.mubr.f32.mxu0 0.0
    %454 = vmatmul.mubr.f32.gmra.mxu0 %v384
    %v455 = vpop.f32.mrf.mxu0
    %v456 = vadd.f32 %v349, %v455
    %v457 = vpop.f32.mrf.mxu0
    %458 = vdwg.mxu0
    %v459 = vlaneseq
    %v460 = vshrl.u32 %v459, 7
    %v461 = vmax.f32 %v456, -4.0
    %v462 = vmin.f32 %v461, 2.0
    %vm463 = vcmp.eq.s32.totalorder %v460, 1
    %v464 = vmul.f32 %v462, 1.442695
    %v465 = vpow.pop %v464
    %v466 = vsel %vm463, %v465, %v456
    %vm467 = vcmask 58368
    %468 = vst.msk [vmem:[#allocation10] sm:$0x3] %vm467, %v466
    // Predicated region
    $region54: #{tpu_custom_call.1} parent=1 // pred_check
      _
    $region55: #{tpu_custom_call.1} parent=1 // pred_check_branch
      %470 = sbr.rel (0) target = $region57
    $region56: #{tpu_custom_call.1} parent=1 // pred_region
      %s472 = ssub.s32 32, 32
      %473 = vsyncadd [#allocation4], %s472
      %s475 = sshll.u32 [#allocation10], 4
      %s476 = int_to_ptr.vmem [resolvable:$true] %s475
      %478 = dma.vmem_to_hbm [thread:$0]  %s476, 32, %s9, [#allocation4]
    $region57: #{tpu_custom_call.1} parent=1 // pred_fallthru
      _
    // Predicated region
    $region58: #{tpu_custom_call.1} parent=1 // pred_check
      _
    $region59: #{tpu_custom_call.1} parent=1 // pred_check_branch
      %480 = sbr.rel (0) target = $region61
    $region60: #{tpu_custom_call.1} parent=1 // pred_region
      %481 = dma.done [#allocation4], 32
    $region61: #{tpu_custom_call.1} parent=1 // pred_fallthru
      _
    %482 = vsyncpa [#allocation3], 1
    %483 = vsyncpa [#allocation6], 1
    %484 = vsyncpa [#allocation9], 1
    %485 = vsyncpa [#allocation4], 1

</llo_original>
